<compile_context>
chip_gen: v7x
topology: tpu7x:2x2x1
jax: 0.10.0
libtpu: 0.0.40
codegen_flags: <defaults>
</compile_context>

<pallas_src>
import functools
import math

import jax
import jax.numpy as jnp
from jax.experimental import pallas as pl
from jax.experimental.pallas import tpu as pltpu

_LANES = 128  # vreg lane width


def _lane_rep(a, n):
    """Broadcast a lane-replicated (rows, 128) f32 array to (rows, n)."""
    lanes = a.shape[-1]
    if n == lanes:
        return a
    if n % lanes == 0:
        return jnp.tile(a, (1, n // lanes))      # cheap: whole-vreg repeat
    return jnp.broadcast_to(a[:, :1], (a.shape[0], n))


# ---------------------------------------------------------------------------
# Kernels
# ---------------------------------------------------------------------------
def _proj_kv_kernel(x_ref, w_ref, b_ref, k_ref, v_ref):
    """Fused 1x1-conv K/V projections for one (batch, spatial-tile) block.

    x_ref : (1, tp, C)  bf16   input features
    w_ref : (C, 2C)     bf16   [wk | wv] transposed weights
    b_ref : (1, 2C)     f32    [bk | bv] biases
    k_ref, v_ref : (1, tp, C) bf16 outputs
    """
    x = x_ref[0]                                                  # (tp, C)
    y = jnp.dot(x, w_ref[...], preferred_element_type=jnp.float32)
    y = y + b_ref[...]                                            # (tp, 2C) f32
    C = k_ref.shape[-1]
    k_ref[0] = y[:, :C].astype(k_ref.dtype)
    v_ref[0] = y[:, C:].astype(v_ref.dtype)


def _flash_attn_kernel(x_ref, wq_ref, bq_ref, k_ref, v_ref, o_ref,
                       q_ref, m_ref, l_ref, acc_ref, *, tkv):
    """Online-softmax attention with fused in-kernel Q projection.

    x_ref : (1, tq, C) bf16   raw features for this q-tile
    wq_ref: (C, C)     bf16   Q weights (pre-scaled by 1/sqrt(C))
    bq_ref: (1, C)     f32    Q bias (pre-scaled)
    k_ref : (1, S or tkv, C) bf16   resident full K, or streamed chunk
    v_ref : (1, S or tkv, C) bf16
    o_ref : (1, tq, C) output dtype
    q_ref : (tq, C) bf16 scratch; m_ref/l_ref: (tq, 128) f32; acc_ref: (tq, C) f32
    """
    j = pl.program_id(2)

    @pl.when(j == 0)
    def _():
        # Project Q once per (batch, q-tile); scale is pre-folded into wq/bq.
        q = jnp.dot(x_ref[0], wq_ref[...], preferred_element_type=jnp.float32)
        q_ref[...] = (q + bq_ref[...]).astype(q_ref.dtype)
        m_ref[...] = jnp.full(m_ref.shape, -jnp.inf, dtype=m_ref.dtype)
        l_ref[...] = jnp.zeros(l_ref.shape, l_ref.dtype)
        acc_ref[...] = jnp.zeros(acc_ref.shape, acc_ref.dtype)

    q = q_ref[...]                                                # (tq, C) bf16

    if k_ref.shape[1] == tkv:
        # Streamed K/V: grid step j already delivered the j-th chunk.
        k = k_ref[0]
        v = v_ref[0]
    else:
        # Resident K/V: full (S, C) kept in VMEM; slice the j-th chunk.
        start = pl.multiple_of(j * tkv, tkv)
        k = k_ref[0, pl.ds(start, tkv), :]
        v = v_ref[0, pl.ds(start, tkv), :]

    # Scores: contract the last dims directly (no explicit K transpose).
    # TODO(synk): if a bundle dump shows a per-step vxpose on this NT
    # contraction (v5e), emit K pre-transposed as (B, C, S) from the proj kernel.
    s = jax.lax.dot_general(
        q, k, dimension_numbers=(((1,), (1,)), ((), ())),
        preferred_element_type=jnp.float32)                       # (tq, tkv) f32

    m_prev = m_ref[...]                                           # (tq, 128)
    m_next = jnp.maximum(m_prev, jnp.max(s, axis=-1, keepdims=True))
    alpha = jnp.exp(m_prev - m_next)                              # (tq, 128)
    p = jnp.exp(s - _lane_rep(m_next, s.shape[-1]))               # (tq, tkv)

    l_ref[...] = alpha * l_ref[...] + jnp.sum(p, axis=-1, keepdims=True)
    pv = jax.lax.dot_general(
        p.astype(v.dtype), v, dimension_numbers=(((1,), (0,)), ((), ())),
        preferred_element_type=jnp.float32)                       # (tq, C) f32
    acc_ref[...] = _lane_rep(alpha, acc_ref.shape[-1]) * acc_ref[...] + pv
    m_ref[...] = m_next

    @pl.when(j == pl.num_programs(2) - 1)
    def _():
        inv_l = pl.reciprocal(l_ref[...], approx=True)            # EUP slot
        o_ref[0] = (acc_ref[...] * _lane_rep(inv_l, acc_ref.shape[-1])
                    ).astype(o_ref.dtype)


# ---------------------------------------------------------------------------
# Wrapper
# ---------------------------------------------------------------------------
def _pick_tile(s, target):
    """Largest divisor of s that is <= target and a multiple of 8
    (preferring multiples of 128), falling back to s itself."""
    if s <= target:
        return s
    for step in (128, 8):
        t = (target // step) * step
        while t >= step:
            if s % t == 0:
                return t
            t -= step
    # TODO(synk): pad + mask awkward S instead of returning one giant block.
    return s


def vanilla_attention(x_nchw, params, *, tq=1024, tkv=512, tp=1024,
                      kv_resident=None):
    """x_nchw: (B, C, H, W) float32. params: conv1x1 weights/biases.

    Returns (B, C, H, W) with the same forward semantics as the PyTorch module.
    """
    B, C, H, W = x_nchw.shape
    S = H * W
    out_dtype = x_nchw.dtype

    # NCHW -> (B, S, C). Cast once to bf16: every consumer is a bf16 MXU
    # matmul, so this halves HBM traffic for x with no extra precision loss.
    x = jnp.transpose(x_nchw.reshape(B, C, S), (0, 2, 1)).astype(jnp.bfloat16)

    # Conv2d(k=1) weight (C_out, C_in, 1, 1) -> matmul form y = x @ W^T + b,
    # with the softmax scale folded into the Q projection once.
    scale = 1.0 / math.sqrt(C)

    def wt(w):
        return jnp.transpose(w.reshape(C, C), (1, 0))             # (C_in, C_out)

    wq = (wt(params["wq"]) * scale).astype(jnp.bfloat16)
    bq = (params["bq"] * scale).reshape(1, C).astype(jnp.float32)
    wkv = jnp.concatenate([wt(params["wk"]), wt(params["wv"])],
                          axis=1).astype(jnp.bfloat16)            # (C, 2C)
    bkv = jnp.concatenate([params["bk"], params["bv"]]
                          ).reshape(1, 2 * C).astype(jnp.float32)

    # ---- tile selection ----
    tq_target = tq
    if B == 1 and S >= 2 * _LANES:
        # Keep >=2 blocks on the parallel axes so both v7x TensorCores get work.
        tq_target = min(tq, S // 2)
    tq_ = _pick_tile(S, tq_target)
    tkv_ = _pick_tile(S, tkv)
    tp_ = _pick_tile(S, tp)

    if kv_resident is None:
        # Keep the full per-batch K and V resident in VMEM whenever they fit
        # a conservative budget (bf16, counted double-buffered): removes all
        # K/V re-streaming (the dominant HBM traffic at small tq).
        kv_resident = 2 * 2 * S * C * 2 <= 24 * 1024 * 1024

    vmem_bytes = 48 * 1024 * 1024

    # ---- K/V projection kernel: [k | v] = x @ [Wk^T | Wv^T] + [bk | bv] ----
    xp_spec = pl.BlockSpec((1, tp_, C), lambda b, i: (b, i, 0))
    k, v = pl.pallas_call(
        _proj_kv_kernel,
        out_shape=[jax.ShapeDtypeStruct((B, S, C), jnp.bfloat16)] * 2,
        grid_spec=pltpu.PrefetchScalarGridSpec(
            num_scalar_prefetch=0,
            grid=(B, S // tp_),
            in_specs=[xp_spec,
                      pl.BlockSpec((C, 2 * C), lambda b, i: (0, 0)),
                      pl.BlockSpec((1, 2 * C), lambda b, i: (0, 0))],
            out_specs=[pl.BlockSpec((1, tp_, C), lambda b, i: (b, i, 0))] * 2,
        ),
        compiler_params=pltpu.CompilerParams(
            dimension_semantics=("parallel", "parallel"),
            vmem_limit_bytes=vmem_bytes),
    )(x, wkv, bkv)

    # ---- flash-attention kernel (fused Q projection) ----
    if kv_resident:
        # Block index independent of i and j: K/V DMA'd once per batch and
        # kept resident; kv chunks are sliced inside the kernel.
        kv_spec = pl.BlockSpec((1, S, C), lambda b, i, j: (b, 0, 0))
    else:
        kv_spec = pl.BlockSpec((1, tkv_, C), lambda b, i, j: (b, j, 0))

    out = pl.pallas_call(
        functools.partial(_flash_attn_kernel, tkv=tkv_),
        out_shape=jax.ShapeDtypeStruct((B, S, C), out_dtype),
        grid_spec=pltpu.PrefetchScalarGridSpec(
            num_scalar_prefetch=0,
            grid=(B, S // tq_, S // tkv_),
            in_specs=[
                pl.BlockSpec((1, tq_, C), lambda b, i, j: (b, i, 0)),   # x
                pl.BlockSpec((C, C), lambda b, i, j: (0, 0)),           # wq
                pl.BlockSpec((1, C), lambda b, i, j: (0, 0)),           # bq
                kv_spec,                                                # k
                kv_spec,                                                # v
            ],
            out_specs=pl.BlockSpec((1, tq_, C), lambda b, i, j: (b, i, 0)),
            scratch_shapes=[
                pltpu.VMEM((tq_, C), jnp.bfloat16),       # projected Q tile
                pltpu.VMEM((tq_, _LANES), jnp.float32),   # running max m
                pltpu.VMEM((tq_, _LANES), jnp.float32),   # running denom l
                pltpu.VMEM((tq_, C), jnp.float32),        # output accumulator
            ],
        ),
        compiler_params=pltpu.CompilerParams(
            dimension_semantics=("parallel", "parallel", "arbitrary"),
            vmem_limit_bytes=vmem_bytes),
    )(x, wq, bq, k, v)

    # (B, S, C) -> NCHW glue.
    return jnp.transpose(out, (0, 2, 1)).reshape(B, C, H, W)


# ---------------------------------------------------------------------------
# Params / reference / test
# ---------------------------------------------------------------------------
def init_params(key, num_channels):
    """Deterministic synthetic init matching nn.Conv2d(C, C, kernel_size=1)."""
    C = num_channels
    keys = jax.random.split(key, 6)
    bound = 1.0 / math.sqrt(C)  # PyTorch default conv init bound (fan_in = C)

    def u(k, shape):
        return jax.random.uniform(k, shape, jnp.float32, -bound, bound)

    return {
        "wq": u(keys[0], (C, C, 1, 1)), "bq": u(keys[1], (C,)),
        "wk": u(keys[2], (C, C, 1, 1)), "bk": u(keys[3], (C,)),
        "wv": u(keys[4], (C, C, 1, 1)), "bv": u(keys[5], (C,)),
    }


def _reference(x_nchw, params):
    """Pure-JAX f32 reference of the PyTorch forward."""
    B, C, H, W = x_nchw.shape
    S = H * W
    x = jnp.transpose(x_nchw.reshape(B, C, S), (0, 2, 1))  # (B, S, C)

    def proj(w, b):
        return jnp.einsum("bsc,oc->bso", x, w.reshape(C, C)) + b.reshape(1, 1, C)

    q = proj(params["wq"], params["bq"])
    k = proj(params["wk"], params["bk"])
    v = proj(params["wv"], params["bv"])
    s = jnp.einsum("bqc,bkc->bqk", q, k) / math.sqrt(C)
    p = jax.nn.softmax(s, axis=-1)
    out = jnp.einsum("bqk,bkc->bqc", p, v)
    return jnp.transpose(out, (0, 2, 1)).reshape(B, C, H, W)


if __name__ == "__main__":
    key = jax.random.PRNGKey(0)
    k_x, k_p = jax.random.split(key)

    B, C, H, W = 2, 4, 16, 16
    x = jax.random.normal(k_x, (B, C, H, W), jnp.float32)
    params = init_params(k_p, C)
    ref = _reference(x, params)

    def check(out):
        assert out.shape == (B, C, H, W)
        # bf16 MXU operands + approx reciprocal relax bit-exactness vs f32 ref.
        assert jnp.allclose(out, ref, atol=5e-2, rtol=5e-2), "mismatch vs reference"

    # Default tiles (single q/kv tile, resident K/V).
    check(jax.block_until_ready(vanilla_attention(x, params)))

    # Multiple q and kv tiles: exercises the multi-step online softmax
    # (alpha rescale, cross-j accumulation) and in-kernel resident K/V slicing.
    check(jax.block_until_ready(vanilla_attention(x, params, tq=128, tkv=128)))

    # Streamed-K/V path (per-step K/V DMA via the kv grid axis).
    check(jax.block_until_ready(
        vanilla_attention(x, params, tq=128, tkv=128, kv_resident=False)))

    print("KERNEL_OK")
</pallas_src>

<mosaic_0001>
module attributes {stable_mosaic.version = 11 : i64} {
  func.func @_proj_kv_kernel(%arg0: i32, %arg1: i32, %arg2: memref<1x256x4xbf16, #tpu.memory_space<vmem>>, %arg3: memref<4x8xbf16, #tpu.memory_space<vmem>>, %arg4: memref<1x8xf32, #tpu.memory_space<vmem>>, %arg5: memref<1x256x4xbf16, #tpu.memory_space<vmem>>, %arg6: memref<1x256x4xbf16, #tpu.memory_space<vmem>>) attributes {dimension_semantics = [#tpu.dimension_semantics<parallel>, #tpu.dimension_semantics<parallel>], iteration_bounds = array<i64: 2, 1>, scalar_prefetch = 0 : i64, scratch_operands = 0 : i64, tpu.core_type = #tpu.core_type<tc>, window_params = [{transform_indices = @transform_0, window_bounds = array<i64: 1, 256, 4>}, {pipeline_mode = #tpu.pipeline_mode<synchronous>, transform_indices = @transform_1, window_bounds = array<i64: 4, 8>}, {pipeline_mode = #tpu.pipeline_mode<synchronous>, transform_indices = @transform_2, window_bounds = array<i64: 1, 8>}, {transform_indices = @transform_3, window_bounds = array<i64: 1, 256, 4>}, {transform_indices = @transform_4, window_bounds = array<i64: 1, 256, 4>}]} {
    %c0 = arith.constant 0 : index
    %c0_0 = arith.constant 0 : index
    %c0_1 = arith.constant 0 : index
    %0 = vector.load %arg2[%c0, %c0_0, %c0_1] : memref<1x256x4xbf16, #tpu.memory_space<vmem>>, vector<1x256x4xbf16>
    %1 = vector.shape_cast %0 : vector<1x256x4xbf16> to vector<256x4xbf16>
    %c0_2 = arith.constant 0 : index
    %c0_3 = arith.constant 0 : index
    %2 = vector.load %arg3[%c0_2, %c0_3] : memref<4x8xbf16, #tpu.memory_space<vmem>>, vector<4x8xbf16>
    %cst = arith.constant dense<0.000000e+00> : vector<256x8xf32>
    %3 = tpu.matmul %1, %2, %cst {dimension_numbers = #tpu.dot_dimension_numbers<[1], [0], [0], [1], [0, 0, 1, 1], [], []>} : vector<256x4xbf16>, vector<4x8xbf16>, vector<256x8xf32> -> vector<256x8xf32>
    %c0_4 = arith.constant 0 : index
    %c0_5 = arith.constant 0 : index
    %4 = vector.load %arg4[%c0_4, %c0_5] : memref<1x8xf32, #tpu.memory_space<vmem>>, vector<1x8xf32>
    %5 = vector.broadcast %4 : vector<1x8xf32> to vector<256x8xf32>
    %6 = arith.addf %3, %5 : vector<256x8xf32>
    %7 = vector.extract_strided_slice %6 {offsets = [0, 0], sizes = [256, 4], strides = [1, 1]} : vector<256x8xf32> to vector<256x4xf32>
    %8 = arith.truncf %7 : vector<256x4xf32> to vector<256x4xbf16>
    %c0_6 = arith.constant 0 : index
    %c0_7 = arith.constant 0 : index
    %c0_8 = arith.constant 0 : index
    %9 = vector.load %arg5[%c0_6, %c0_7, %c0_8] : memref<1x256x4xbf16, #tpu.memory_space<vmem>>, vector<1x256x4xbf16>
    %10 = vector.shape_cast %9 : vector<1x256x4xbf16> to vector<256x4xbf16>
    %11 = vector.shape_cast %8 : vector<256x4xbf16> to vector<1x256x4xbf16>
    tpu.vector_store %arg5[%c0_6, %c0_7, %c0_8], %11 {strides = array<i32>} : memref<1x256x4xbf16, #tpu.memory_space<vmem>>, vector<1x256x4xbf16>,
    %12 = vector.extract_strided_slice %6 {offsets = [0, 4], sizes = [256, 4], strides = [1, 1]} : vector<256x8xf32> to vector<256x4xf32>
    %13 = arith.truncf %12 : vector<256x4xf32> to vector<256x4xbf16>
    %c0_9 = arith.constant 0 : index
    %c0_10 = arith.constant 0 : index
    %c0_11 = arith.constant 0 : index
    %14 = vector.load %arg6[%c0_9, %c0_10, %c0_11] : memref<1x256x4xbf16, #tpu.memory_space<vmem>>, vector<1x256x4xbf16>
    %15 = vector.shape_cast %14 : vector<1x256x4xbf16> to vector<256x4xbf16>
    %16 = vector.shape_cast %13 : vector<256x4xbf16> to vector<1x256x4xbf16>
    tpu.vector_store %arg6[%c0_9, %c0_10, %c0_11], %16 {strides = array<i32>} : memref<1x256x4xbf16, #tpu.memory_space<vmem>>, vector<1x256x4xbf16>,
    return
  }
  func.func @transform_0(%arg0: i32, %arg1: i32) -> (i32, i32, i32) {
    %c0_i32 = arith.constant 0 : i32
    %c0_i32_0 = arith.constant 0 : i32
    return %arg0, %arg1, %c0_i32 : i32, i32, i32
  }
  func.func @transform_1(%arg0: i32, %arg1: i32) -> (i32, i32) {
    %c0_i32 = arith.constant 0 : i32
    %c0_i32_0 = arith.constant 0 : i32
    %c0_i32_1 = arith.constant 0 : i32
    return %c0_i32, %c0_i32_0 : i32, i32
  }
  func.func @transform_2(%arg0: i32, %arg1: i32) -> (i32, i32) {
    %c0_i32 = arith.constant 0 : i32
    %c0_i32_0 = arith.constant 0 : i32
    %c0_i32_1 = arith.constant 0 : i32
    return %c0_i32, %c0_i32_0 : i32, i32
  }
  func.func @transform_3(%arg0: i32, %arg1: i32) -> (i32, i32, i32) {
    %c0_i32 = arith.constant 0 : i32
    %c0_i32_0 = arith.constant 0 : i32
    return %arg0, %arg1, %c0_i32 : i32, i32, i32
  }
  func.func @transform_4(%arg0: i32, %arg1: i32) -> (i32, i32, i32) {
    %c0_i32 = arith.constant 0 : i32
    %c0_i32_0 = arith.constant 0 : i32
    return %arg0, %arg1, %c0_i32 : i32, i32, i32
  }
}

</mosaic_0001>

<llo_original>
// kernel: tpu_custom_call.1
$region0: #{tpu_custom_call.1}
  #allocation0 [shape = 'u32[]', space=smem, size = 0x4, offset = 0x4, fixed_abs, tag = 'smem constant byte address 0x4 - core index']
  #allocation1 [shape = 'u32[144,128]{1,0:T(1,128)}', space=vmem, size = 0x12000, scoped, tag = 'internal scratch']
  %s0 = inlined_call_operand.vmem [shape: bf16[2,256,4], index: 0, kind: input, shape index: {}]
  %s1 = inlined_call_operand.vmem [shape: bf16[4,8], index: 1, kind: input, shape index: {}]
  %s2 = inlined_call_operand.vmem [shape: f32[1,8], index: 2, kind: input, shape index: {}]
  %s3 = inlined_call_operand.vmem [shape: bf16[2,256,4], index: 3, kind: output, shape index: {0}]
  %s4 = inlined_call_operand.vmem [shape: bf16[2,256,4], index: 4, kind: output, shape index: {1}]
  %5 = xla_tuple %s3, %s4
  %s6 = sld [smem:[#allocation0]]
  $region53: #{tpu_custom_call.1} parent=0
    _
  %s8 = ssub.s32 1, %s6
  %s9 = scalar_select 0, %s8, %s6
  loop: start=0, step=1, limit=4
  $region2: #{tpu_custom_call.1} parent=0 // loop_pre_header
    _
  $region3: #{tpu_custom_call.1} parent=0 // loop_header
    %s11 = sphi 0, %s15
    %p12 = scmp.ge.s32.totalorder %s11, 4
    %s18 = sphi 0, %s30
    %s19 = sphi 0, %s26
    %s20 = sphi 0, %s18
    %s21 = sphi 0, %s19
    %s22 = sphi 0, %s20
    %s23 = sphi 0, %s21
    %s35 = sphi 0, %s37
    %s38 = sphi 0, %s35
    %s39 = sphi 0, %s38
    %s55 = sphi 0, %s39
    %s59 = sphi 0, %s59
    %s61 = sphi 0, %s59
    %s62 = sphi 0, %s61
    %s76 = sphi 0, %s62
    %s80 = sphi 0, %s80
    %s82 = sphi 0, %s80
    %s83 = sphi 0, %s82
    %s97 = sphi 0, %s83
    %s105 = sphi 0, %s107
    %s108 = sphi 0, %s105
    %s109 = sphi 0, %s108
    %s125 = sphi 0, %s109
    %s133 = sphi 0, %s135
    %s136 = sphi 0, %s133
    %s137 = sphi 0, %s136
    %s153 = sphi 0, %s137
  $region4: #{tpu_custom_call.1} parent=0 // loop_header_branch
    %14 = sbr.rel (%p12) target = $region8
  $region5: #{tpu_custom_call.1} parent=0 // loop_body
    %s16 = ssub.s32 %s11, 1
    %s17 = ssub.s32 %s11, 2
    %s24 = sadd.s32 1, %s19
    %p25 = scmp.ge.s32.totalorder %s24, 1
    %s26 = scalar_select %p25, 0, %s24
    %s27 = sadd.s32 1, %s18
    %s28 = scalar_select %p25, %s27, %s18
    %p29 = scmp.ge.s32.totalorder %s28, 2
    %s30 = scalar_select %p29, 0, %s28
    %s31 = ssub.s32 %s18, %s30
    %s32 = ssub.s32 %s19, %s26
    %s33 = sor.u32 %s31, %s32
    %p34 = scmp.eq.s32.totalorder %s33, 0
    %s36 = sadd.s32 %s35, 1
    %s37 = scalar_select %p34, %s35, %s36
    %p40 = pneg %p34
    %p41 = scmp.eq.s32.totalorder %s11, 1
    %p42 = por %p40, %p41
    %p43 = scmp.ne.s32.totalorder %s35, %s38
    %p44 = scmp.eq.s32.totalorder %s11, 0
    %p45 = por %p43, %p44
    %p46 = scmp.ne.s32.totalorder %s35, %s38
    %p47 = scmp.eq.s32.totalorder %s16, 1
    %p48 = por %p46, %p47
    %p49 = scmp.ne.s32.totalorder %s38, %s39
    %p50 = scmp.eq.s32.totalorder %s16, 0
    %p51 = por %p49, %p50
    %p52 = scmp.ne.s32.totalorder %s38, %s39
    %p53 = scmp.eq.s32.totalorder %s17, 1
    %p54 = por %p52, %p53
    %p56 = scmp.ne.s32.totalorder %s39, %s55
    %p57 = scmp.eq.s32.totalorder %s17, 0
    %p58 = por %p56, %p57
    %s60 = sadd.s32 %s59, 1
    %p63 = scmp.eq.s32.totalorder %s11, 1
    %p64 = scmp.ne.s32.totalorder %s59, %s61
    %p65 = scmp.eq.s32.totalorder %s11, 0
    %p66 = por %p64, %p65
    %p67 = scmp.ne.s32.totalorder %s59, %s61
    %p68 = scmp.eq.s32.totalorder %s16, 1
    %p69 = por %p67, %p68
    %p70 = scmp.ne.s32.totalorder %s61, %s62
    %p71 = scmp.eq.s32.totalorder %s16, 0
    %p72 = por %p70, %p71
    %p73 = scmp.ne.s32.totalorder %s61, %s62
    %p74 = scmp.eq.s32.totalorder %s17, 1
    %p75 = por %p73, %p74
    %p77 = scmp.ne.s32.totalorder %s62, %s76
    %p78 = scmp.eq.s32.totalorder %s17, 0
    %p79 = por %p77, %p78
    %s81 = sadd.s32 %s80, 1
    %p84 = scmp.eq.s32.totalorder %s11, 1
    %p85 = scmp.ne.s32.totalorder %s80, %s82
    %p86 = scmp.eq.s32.totalorder %s11, 0
    %p87 = por %p85, %p86
    %p88 = scmp.ne.s32.totalorder %s80, %s82
    %p89 = scmp.eq.s32.totalorder %s16, 1
    %p90 = por %p88, %p89
    %p91 = scmp.ne.s32.totalorder %s82, %s83
    %p92 = scmp.eq.s32.totalorder %s16, 0
    %p93 = por %p91, %p92
    %p94 = scmp.ne.s32.totalorder %s82, %s83
    %p95 = scmp.eq.s32.totalorder %s17, 1
    %p96 = por %p94, %p95
    %p98 = scmp.ne.s32.totalorder %s83, %s97
    %p99 = scmp.eq.s32.totalorder %s17, 0
    %p100 = por %p98, %p99
    %s101 = ssub.s32 %s18, %s30
    %s102 = ssub.s32 %s19, %s26
    %s103 = sor.u32 %s101, %s102
    %p104 = scmp.eq.s32.totalorder %s103, 0
    %s106 = sadd.s32 %s105, 1
    %s107 = scalar_select %p104, %s105, %s106
    %p110 = pneg %p104
    %p111 = scmp.eq.s32.totalorder %s11, 1
    %p112 = por %p110, %p111
    %p113 = scmp.ne.s32.totalorder %s105, %s108
    %p114 = scmp.eq.s32.totalorder %s11, 0
    %p115 = por %p113, %p114
    %p116 = scmp.ne.s32.totalorder %s105, %s108
    %p117 = scmp.eq.s32.totalorder %s16, 1
    %p118 = por %p116, %p117
    %p119 = scmp.ne.s32.totalorder %s108, %s109
    %p120 = scmp.eq.s32.totalorder %s16, 0
    %p121 = por %p119, %p120
    %p122 = scmp.ne.s32.totalorder %s108, %s109
    %p123 = scmp.eq.s32.totalorder %s17, 1
    %p124 = por %p122, %p123
    %p126 = scmp.ne.s32.totalorder %s109, %s125
    %p127 = scmp.eq.s32.totalorder %s17, 0
    %p128 = por %p126, %p127
    %s129 = ssub.s32 %s18, %s30
    %s130 = ssub.s32 %s19, %s26
    %s131 = sor.u32 %s129, %s130
    %p132 = scmp.eq.s32.totalorder %s131, 0
    %s134 = sadd.s32 %s133, 1
    %s135 = scalar_select %p132, %s133, %s134
    %p138 = pneg %p132
    %p139 = scmp.eq.s32.totalorder %s11, 1
    %p140 = por %p138, %p139
    %p141 = scmp.ne.s32.totalorder %s133, %s136
    %p142 = scmp.eq.s32.totalorder %s11, 0
    %p143 = por %p141, %p142
    %p144 = scmp.ne.s32.totalorder %s133, %s136
    %p145 = scmp.eq.s32.totalorder %s16, 1
    %p146 = por %p144, %p145
    %p147 = scmp.ne.s32.totalorder %s136, %s137
    %p148 = scmp.eq.s32.totalorder %s16, 0
    %p149 = por %p147, %p148
    %p150 = scmp.ne.s32.totalorder %s136, %s137
    %p151 = scmp.eq.s32.totalorder %s17, 1
    %p152 = por %p150, %p151
    %p154 = scmp.ne.s32.totalorder %s137, %s153
    %p155 = scmp.eq.s32.totalorder %s17, 0
    %p156 = por %p154, %p155
    %p157 = scmp.le.s32.totalorder 1, %s11
    %p158 = scmp.lt.s32.totalorder %s11, 3
    %p159 = pnand %p157, %p158
    %p160 = pneg %p159
    // Predicated region
    $region9: #{tpu_custom_call.1} parent=5 // pred_check
      _
    $region10: #{tpu_custom_call.1} parent=5 // pred_check_branch
      %162 = sbr.rel (%p159) target = $region12
    $region11: #{tpu_custom_call.1} parent=5 // pred_region
      %s163 = ssub.s32 %s11, 1
      // Predicated region
      $region13: #{tpu_custom_call.1} parent=11 // pred_check
        %p164 = pneg %p72
      $region14: #{tpu_custom_call.1} parent=11 // pred_check_branch
        %166 = sbr.rel (%p164) target = $region16
      $region15: #{tpu_custom_call.1} parent=11 // pred_region
        _
      $region16: #{tpu_custom_call.1} parent=11 // pred_fallthru
        _
      // Predicated region
      $region17: #{tpu_custom_call.1} parent=11 // pred_check
        %p167 = pneg %p93
      $region18: #{tpu_custom_call.1} parent=11 // pred_check_branch
        %169 = sbr.rel (%p167) target = $region20
      $region19: #{tpu_custom_call.1} parent=11 // pred_region
        _
      $region20: #{tpu_custom_call.1} parent=11 // pred_fallthru
        _
    $region12: #{tpu_custom_call.1} parent=5 // pred_fallthru
      _
    %p170 = scmp.lt.s32.totalorder %s11, 2
    // Predicated region
    $region21: #{tpu_custom_call.1} parent=5 // pred_check
      %p171 = pneg %p170
    $region22: #{tpu_custom_call.1} parent=5 // pred_check_branch
      %173 = sbr.rel (%p171) target = $region24
    $region23: #{tpu_custom_call.1} parent=5 // pred_region
      // Predicated region
      $region25: #{tpu_custom_call.1} parent=23 // pred_check
        %p174 = pneg %p45
      $region26: #{tpu_custom_call.1} parent=23 // pred_check_branch
        %176 = sbr.rel (%p174) target = $region28
      $region27: #{tpu_custom_call.1} parent=23 // pred_region
        %s177 = smul.u32 32, %s19
        %p178 = scmp.lt.s32.totalorder %s18, 1
        %s179 = scalar_select %p178, %s18, 1
        %p180 = scmp.lt.s32.totalorder %s177, 31
        %s181 = scalar_select %p180, %s177, 31
        %s182 = smul.addr %s179, 32
        %s183 = sadd.s32 %s181, %s182
        %s184 = smul.addr %s183, 4
        %s185 = scalar_lea.vmem %s0, %s184
        %s186 = smul.u32 32, %s19
      $region28: #{tpu_custom_call.1} parent=23 // pred_fallthru
        _
    $region24: #{tpu_custom_call.1} parent=5 // pred_fallthru
      _
    %p187 = scmp.le.s32.totalorder 1, %s11
    %p188 = scmp.lt.s32.totalorder %s11, 3
    %p189 = pnand %p187, %p188
    %p190 = pneg %p189
    // Predicated region
    $region29: #{tpu_custom_call.1} parent=5 // pred_check
      _
    $region30: #{tpu_custom_call.1} parent=5 // pred_check_branch
      %192 = sbr.rel (%p189) target = $region32
    $region31: #{tpu_custom_call.1} parent=5 // pred_region
      %s193 = ssub.s32 %s11, 1
      %s194 = smul.u32 32, %s21
      %p195 = scmp.lt.s32.totalorder %s20, 1
      %s196 = scalar_select %p195, %s20, 1
      %p197 = scmp.lt.s32.totalorder %s194, 31
      %s198 = scalar_select %p197, %s194, 31
      %s199 = smul.addr %s196, 32
      %s200 = sadd.s32 %s198, %s199
      %s201 = smul.addr %s200, 4
      %s202 = scalar_lea.vmem %s0, %s201
      %p203 = pneg %p51
      %p204 = pneg %p48
      %p205 = pneg %p72
      %p206 = pneg %p69
      %p207 = pneg %p93
      %p208 = pneg %p90
      %p209 = pneg %p121
      %p210 = pneg %p118
      %s211 = smul.u32 32, %s21
      %p212 = scmp.lt.s32.totalorder %s20, 1
      %s213 = scalar_select %p212, %s20, 1
      %p214 = scmp.lt.s32.totalorder %s211, 31
      %s215 = scalar_select %p214, %s211, 31
      %s216 = smul.addr %s213, 32
      %s217 = sadd.s32 %s215, %s216
      %s218 = smul.addr %s217, 4
      %s219 = scalar_lea.vmem %s3, %s218
      %p220 = pneg %p149
      %p221 = pneg %p146
      %s222 = smul.u32 32, %s21
      %p223 = scmp.lt.s32.totalorder %s20, 1
      %s224 = scalar_select %p223, %s20, 1
      %p225 = scmp.lt.s32.totalorder %s222, 31
      %s226 = scalar_select %p225, %s222, 31
      %s227 = smul.addr %s224, 32
      %s228 = sadd.s32 %s226, %s227
      %s229 = smul.addr %s228, 4
      %s230 = scalar_lea.vmem %s4, %s229
      %s231 = smul.u32 32, %s21
      %p232 = scmp.lt.s32.totalorder %s20, 1
      %s233 = scalar_select %p232, %s20, 1
      %p234 = scmp.lt.s32.totalorder %s231, 31
      %s235 = scalar_select %p234, %s231, 31
      %s236 = smul.addr %s233, 32
      %s237 = sadd.s32 %s235, %s236
      %s238 = smul.addr %s237, 4
      %s239 = scalar_lea.vmem %s0, %s238
      %s240 = smul.u32 32, %s21
      %s241 = smul.u32 32, %s21
      %p242 = scmp.lt.s32.totalorder %s20, 1
      %s243 = scalar_select %p242, %s20, 1
      %p244 = scmp.lt.s32.totalorder %s241, 31
      %s245 = scalar_select %p244, %s241, 31
      %s246 = smul.addr %s243, 32
      %s247 = sadd.s32 %s245, %s246
      %s248 = smul.addr %s247, 4
      %s249 = scalar_lea.vmem %s3, %s248
      %s250 = smul.u32 32, %s21
      %s251 = smul.u32 32, %s21
      %p252 = scmp.lt.s32.totalorder %s20, 1
      %s253 = scalar_select %p252, %s20, 1
      %p254 = scmp.lt.s32.totalorder %s251, 31
      %s255 = scalar_select %p254, %s251, 31
      %s256 = smul.addr %s253, 32
      %s257 = sadd.s32 %s255, %s256
      %s258 = smul.addr %s257, 4
      %s259 = scalar_lea.vmem %s4, %s258
      %s260 = smul.u32 32, %s21
      %v262 = vld [vmem:[%s239] sm:$0xf]
      %v263 = vld [vmem:[%s239 + $0x4] sm:$0xf]
      %v264 = vld [vmem:[%s239 + $0x8] sm:$0xf]
      %v265 = vld [vmem:[%s239 + $0xc] sm:$0xf]
      %v266 = vld [vmem:[%s239 + $0x10] sm:$0xf]
      %v267 = vld [vmem:[%s239 + $0x14] sm:$0xf]
      %v268 = vld [vmem:[%s239 + $0x18] sm:$0xf]
      %v269 = vld [vmem:[%s239 + $0x1c] sm:$0xf]
      %v270 = vld [vmem:[%s239 + $0x20] sm:$0xf]
      %v271 = vld [vmem:[%s239 + $0x24] sm:$0xf]
      %v272 = vld [vmem:[%s239 + $0x28] sm:$0xf]
      %v273 = vld [vmem:[%s239 + $0x2c] sm:$0xf]
      %v274 = vld [vmem:[%s239 + $0x30] sm:$0xf]
      %v275 = vld [vmem:[%s239 + $0x34] sm:$0xf]
      %v276 = vld [vmem:[%s239 + $0x38] sm:$0xf]
      %v277 = vld [vmem:[%s239 + $0x3c] sm:$0xf]
      %v278 = vld [vmem:[%s239 + $0x40] sm:$0xf]
      %v279 = vld [vmem:[%s239 + $0x44] sm:$0xf]
      %v280 = vld [vmem:[%s239 + $0x48] sm:$0xf]
      %v281 = vld [vmem:[%s239 + $0x4c] sm:$0xf]
      %v282 = vld [vmem:[%s239 + $0x50] sm:$0xf]
      %v283 = vld [vmem:[%s239 + $0x54] sm:$0xf]
      %v284 = vld [vmem:[%s239 + $0x58] sm:$0xf]
      %v285 = vld [vmem:[%s239 + $0x5c] sm:$0xf]
      %v286 = vld [vmem:[%s239 + $0x60] sm:$0xf]
      %v287 = vld [vmem:[%s239 + $0x64] sm:$0xf]
      %v288 = vld [vmem:[%s239 + $0x68] sm:$0xf]
      %v289 = vld [vmem:[%s239 + $0x6c] sm:$0xf]
      %v290 = vld [vmem:[%s239 + $0x70] sm:$0xf]
      %v291 = vld [vmem:[%s239 + $0x74] sm:$0xf]
      %v292 = vld [vmem:[%s239 + $0x78] sm:$0xf]
      %v293 = vld [vmem:[%s239 + $0x7c] sm:$0xf]
      %v294 = vld [vmem:[%s1] sm:$0x3]
      %v295 = vld [vmem:[%s2] sm:$0x1]
      %v297 = vlaneseq
      %v298 = vshrl.u32 %v297, 7
      %v299 = vsub.s32 0, %v298
      %v300 = vrot.slane %v295, %v299
      %v334 = vunpack.c.l.b16 %v262
      %v335 = vunpack.c.l.b16 %v263
      %v336 = vunpack.c.l.b16 %v264
      %v337 = vunpack.c.l.b16 %v265
      %v338 = vunpack.c.l.b16 %v266
      %v339 = vunpack.c.l.b16 %v267
      %v340 = vunpack.c.l.b16 %v268
      %v341 = vunpack.c.l.b16 %v269
      %v342 = vunpack.c.l.b16 %v270
      %v343 = vunpack.c.l.b16 %v271
      %v344 = vunpack.c.l.b16 %v272
      %v345 = vunpack.c.l.b16 %v273
      %v346 = vunpack.c.l.b16 %v274
      %v347 = vunpack.c.l.b16 %v275
      %v348 = vunpack.c.l.b16 %v276
      %v349 = vunpack.c.l.b16 %v277
      %v350 = vunpack.c.l.b16 %v278
      %v351 = vunpack.c.l.b16 %v279
      %v352 = vunpack.c.l.b16 %v280
      %v353 = vunpack.c.l.b16 %v281
      %v354 = vunpack.c.l.b16 %v282
      %v355 = vunpack.c.l.b16 %v283
      %v356 = vunpack.c.l.b16 %v284
      %v357 = vunpack.c.l.b16 %v285
      %v358 = vunpack.c.l.b16 %v286
      %v359 = vunpack.c.l.b16 %v287
      %v360 = vunpack.c.l.b16 %v288
      %v361 = vunpack.c.l.b16 %v289
      %v362 = vunpack.c.l.b16 %v290
      %v363 = vunpack.c.l.b16 %v291
      %v364 = vunpack.c.l.b16 %v292
      %v365 = vunpack.c.l.b16 %v293
      %v366 = vpack.c.b16 %v335, %v334
      %v367 = vpack.c.b16 %v337, %v336
      %v368 = vpack.c.b16 %v339, %v338
      %v369 = vpack.c.b16 %v341, %v340
      %v370 = vpack.c.b16 %v343, %v342
      %v371 = vpack.c.b16 %v345, %v344
      %v372 = vpack.c.b16 %v347, %v346
      %v373 = vpack.c.b16 %v349, %v348
      %v374 = vpack.c.b16 %v351, %v350
      %v375 = vpack.c.b16 %v353, %v352
      %v376 = vpack.c.b16 %v355, %v354
      %v377 = vpack.c.b16 %v357, %v356
      %v378 = vpack.c.b16 %v359, %v358
      %v379 = vpack.c.b16 %v361, %v360
      %v380 = vpack.c.b16 %v363, %v362
      %v381 = vpack.c.b16 %v365, %v364
      %vm382 = vcmask 31744
      %v384 = vsel %vm382, %v366, 0
      %v387 = vsel %vm382, %v367, 0
      %v390 = vsel %vm382, %v368, 0
      %v393 = vsel %vm382, %v369, 0
      %v396 = vsel %vm382, %v370, 0
      %v399 = vsel %vm382, %v371, 0
      %v402 = vsel %vm382, %v372, 0
      %v405 = vsel %vm382, %v373, 0
      %v408 = vsel %vm382, %v374, 0
      %v411 = vsel %vm382, %v375, 0
      %v414 = vsel %vm382, %v376, 0
      %v417 = vsel %vm382, %v377, 0
      %v420 = vsel %vm382, %v378, 0
      %v423 = vsel %vm382, %v379, 0
      %v426 = vsel %vm382, %v380, 0
      %v429 = vsel %vm382, %v381, 0
      %vm431 = vcmask 1041408
      %v433 = vsel %vm431, %v294, 0
      %435 = vmatprep.subr.bf16.mxu0 0
      %436 = vmatpush1.bf16.msra.mxu0 %v433
      %437 = vmatprep.subr.bf16.mxu0 0
      %438 = vmatpush1.bf16.msra.mxu0 0
      %439 = vmatprep.subr.bf16.mxu0 0
      %440 = vmatpush1.bf16.msra.mxu0 0
      %441 = vmatprep.subr.bf16.mxu0 0
      %442 = vmatpush1.bf16.msra.mxu0 0
      %443 = vmatprep.subr.bf16.mxu0 0
      %444 = vmatpush1.bf16.msra.mxu0 0
      %445 = vmatprep.subr.bf16.mxu0 0
      %446 = vmatpush1.bf16.msra.mxu0 0
      %447 = vmatprep.subr.bf16.mxu0 0
      %448 = vmatpush1.bf16.msra.mxu0 0
      %449 = vmatprep.subr.bf16.mxu0 0
      %450 = vmatpush1.bf16.msra.mxu0 0
      %451 = vmatprep.subr.bf16.mxu0 0
      %452 = vmatpush1.bf16.msra.mxu0 0
      %453 = vmatprep.subr.bf16.mxu0 0
      %454 = vmatpush1.bf16.msra.mxu0 0
      %455 = vmatprep.subr.bf16.mxu0 0
      %456 = vmatpush1.bf16.msra.mxu0 0
      %457 = vmatprep.subr.bf16.mxu0 0
      %458 = vmatpush1.bf16.msra.mxu0 0
      %459 = vmatprep.subr.bf16.mxu0 0
      %460 = vmatpush1.bf16.msra.mxu0 0
      %461 = vmatprep.subr.bf16.mxu0 0
      %462 = vmatpush1.bf16.msra.mxu0 0
      %463 = vmatprep.subr.bf16.mxu0 0
      %464 = vmatpush1.bf16.msra.mxu0 0
      %465 = vmatprep.subr.bf16.mxu0 0
      %466 = vmatpush1.bf16.msra.mxu0 0
      %467 = vmatprep.mubr.bf16.mxu0 0
      %468 = vmatmul.mubr.bf16.gmra.mrb[0].mxu0 %v384
      %v469 = vpop.f32.mrb[0].mxu0
      %v470 = vadd.f32 %v300, %v469
      %v471 = vpop.f32.mrb[0].mxu0
      %v472 = vpop.f32.mrb[0].mxu0
      %v473 = vadd.f32 %v300, %v472
      %v474 = vpop.f32.mrb[0].mxu0
      %475 = vmatprep.mubr.bf16.mxu0 0
      %476 = vmatmul.mubr.bf16.gmra.mrb[0].mxu0 %v387
      %v477 = vpop.f32.mrb[0].mxu0
      %v478 = vadd.f32 %v300, %v477
      %v479 = vpop.f32.mrb[0].mxu0
      %v480 = vpop.f32.mrb[0].mxu0
      %v481 = vadd.f32 %v300, %v480
      %v482 = vpop.f32.mrb[0].mxu0
      %483 = vmatprep.mubr.bf16.mxu0 0
      %484 = vmatmul.mubr.bf16.gmra.mrb[0].mxu0 %v390
      %v485 = vpop.f32.mrb[0].mxu0
      %v486 = vadd.f32 %v300, %v485
      %v487 = vpop.f32.mrb[0].mxu0
      %v488 = vpop.f32.mrb[0].mxu0
      %v489 = vadd.f32 %v300, %v488
      %v490 = vpop.f32.mrb[0].mxu0
      %491 = vmatprep.mubr.bf16.mxu0 0
      %492 = vmatmul.mubr.bf16.gmra.mrb[0].mxu0 %v393
      %v493 = vpop.f32.mrb[0].mxu0
      %v494 = vadd.f32 %v300, %v493
      %v495 = vpop.f32.mrb[0].mxu0
      %v496 = vpop.f32.mrb[0].mxu0
      %v497 = vadd.f32 %v300, %v496
      %v498 = vpop.f32.mrb[0].mxu0
      %499 = vmatprep.mubr.bf16.mxu0 0
      %500 = vmatmul.mubr.bf16.gmra.mrb[0].mxu0 %v396
      %v501 = vpop.f32.mrb[0].mxu0
      %v502 = vadd.f32 %v300, %v501
      %v503 = vpop.f32.mrb[0].mxu0
      %v504 = vpop.f32.mrb[0].mxu0
      %v505 = vadd.f32 %v300, %v504
      %v506 = vpop.f32.mrb[0].mxu0
      %507 = vmatprep.mubr.bf16.mxu0 0
      %508 = vmatmul.mubr.bf16.gmra.mrb[0].mxu0 %v399
      %v509 = vpop.f32.mrb[0].mxu0
      %v510 = vadd.f32 %v300, %v509
      %v511 = vpop.f32.mrb[0].mxu0
      %v512 = vpop.f32.mrb[0].mxu0
      %v513 = vadd.f32 %v300, %v512
      %v514 = vpop.f32.mrb[0].mxu0
      %515 = vmatprep.mubr.bf16.mxu0 0
      %516 = vmatmul.mubr.bf16.gmra.mrb[0].mxu0 %v402
      %v517 = vpop.f32.mrb[0].mxu0
      %v518 = vadd.f32 %v300, %v517
      %v519 = vpop.f32.mrb[0].mxu0
      %v520 = vpop.f32.mrb[0].mxu0
      %v521 = vadd.f32 %v300, %v520
      %v522 = vpop.f32.mrb[0].mxu0
      %523 = vmatprep.mubr.bf16.mxu0 0
      %524 = vmatmul.mubr.bf16.gmra.mrb[0].mxu0 %v405
      %v525 = vpop.f32.mrb[0].mxu0
      %v526 = vadd.f32 %v300, %v525
      %v527 = vpop.f32.mrb[0].mxu0
      %v528 = vpop.f32.mrb[0].mxu0
      %v529 = vadd.f32 %v300, %v528
      %v530 = vpop.f32.mrb[0].mxu0
      %531 = vmatprep.mubr.bf16.mxu0 0
      %532 = vmatmul.mubr.bf16.gmra.mrb[0].mxu0 %v408
      %v533 = vpop.f32.mrb[0].mxu0
      %v534 = vadd.f32 %v300, %v533
      %v535 = vpop.f32.mrb[0].mxu0
      %v536 = vpop.f32.mrb[0].mxu0
      %v537 = vadd.f32 %v300, %v536
      %v538 = vpop.f32.mrb[0].mxu0
      %539 = vmatprep.mubr.bf16.mxu0 0
      %540 = vmatmul.mubr.bf16.gmra.mrb[0].mxu0 %v411
      %v541 = vpop.f32.mrb[0].mxu0
      %v542 = vadd.f32 %v300, %v541
      %v543 = vpop.f32.mrb[0].mxu0
      %v544 = vpop.f32.mrb[0].mxu0
      %v545 = vadd.f32 %v300, %v544
      %v546 = vpop.f32.mrb[0].mxu0
      %547 = vmatprep.mubr.bf16.mxu0 0
      %548 = vmatmul.mubr.bf16.gmra.mrb[0].mxu0 %v414
      %v549 = vpop.f32.mrb[0].mxu0
      %v550 = vadd.f32 %v300, %v549
      %v551 = vpop.f32.mrb[0].mxu0
      %v552 = vpop.f32.mrb[0].mxu0
      %v553 = vadd.f32 %v300, %v552
      %v554 = vpop.f32.mrb[0].mxu0
      %555 = vmatprep.mubr.bf16.mxu0 0
      %556 = vmatmul.mubr.bf16.gmra.mrb[0].mxu0 %v417
      %v557 = vpop.f32.mrb[0].mxu0
      %v558 = vadd.f32 %v300, %v557
      %v559 = vpop.f32.mrb[0].mxu0
      %v560 = vpop.f32.mrb[0].mxu0
      %v561 = vadd.f32 %v300, %v560
      %v562 = vpop.f32.mrb[0].mxu0
      %563 = vmatprep.mubr.bf16.mxu0 0
      %564 = vmatmul.mubr.bf16.gmra.mrb[0].mxu0 %v420
      %v565 = vpop.f32.mrb[0].mxu0
      %v566 = vadd.f32 %v300, %v565
      %v567 = vpop.f32.mrb[0].mxu0
      %v568 = vpop.f32.mrb[0].mxu0
      %v569 = vadd.f32 %v300, %v568
      %v570 = vpop.f32.mrb[0].mxu0
      %571 = vmatprep.mubr.bf16.mxu0 0
      %572 = vmatmul.mubr.bf16.gmra.mrb[0].mxu0 %v423
      %v573 = vpop.f32.mrb[0].mxu0
      %v574 = vadd.f32 %v300, %v573
      %v575 = vpop.f32.mrb[0].mxu0
      %v576 = vpop.f32.mrb[0].mxu0
      %v577 = vadd.f32 %v300, %v576
      %v578 = vpop.f32.mrb[0].mxu0
      %579 = vmatprep.mubr.bf16.mxu0 0
      %580 = vmatmul.mubr.bf16.gmra.mrb[0].mxu0 %v426
      %v581 = vpop.f32.mrb[0].mxu0
      %v582 = vadd.f32 %v300, %v581
      %v583 = vpop.f32.mrb[0].mxu0
      %v584 = vpop.f32.mrb[0].mxu0
      %v585 = vadd.f32 %v300, %v584
      %v586 = vpop.f32.mrb[0].mxu0
      %587 = vmatprep.mubr.bf16.mxu0 0
      %588 = vmatmul.mubr.bf16.gmra.mrb[0].mxu0 %v429
      %v589 = vpop.f32.mrb[0].mxu0
      %v590 = vadd.f32 %v300, %v589
      %v591 = vpop.f32.mrb[0].mxu0
      %v592 = vpop.f32.mrb[0].mxu0
      %v593 = vadd.f32 %v300, %v592
      %v594 = vpop.f32.mrb[0].mxu0
      %595 = vdwg.mxu0
      %v596 = vpack.c.bf16 %v473, %v470
      %v597 = vpack.c.bf16 %v481, %v478
      %v598 = vpack.c.bf16 %v489, %v486
      %v599 = vpack.c.bf16 %v497, %v494
      %v600 = vpack.c.bf16 %v505, %v502
      %v601 = vpack.c.bf16 %v513, %v510
      %v602 = vpack.c.bf16 %v521, %v518
      %v603 = vpack.c.bf16 %v529, %v526
      %v604 = vpack.c.bf16 %v537, %v534
      %v605 = vpack.c.bf16 %v545, %v542
      %v606 = vpack.c.bf16 %v553, %v550
      %v607 = vpack.c.bf16 %v561, %v558
      %v608 = vpack.c.bf16 %v569, %v566
      %v609 = vpack.c.bf16 %v577, %v574
      %v610 = vpack.c.bf16 %v585, %v582
      %v611 = vpack.c.bf16 %v593, %v590
      %v628 = vunpack.c.l.b16 %v596
      %v629 = vunpack.c.h.b16 %v596
      %v630 = vunpack.c.l.b16 %v597
      %v631 = vunpack.c.h.b16 %v597
      %v632 = vunpack.c.l.b16 %v598
      %v633 = vunpack.c.h.b16 %v598
      %v634 = vunpack.c.l.b16 %v599
      %v635 = vunpack.c.h.b16 %v599
      %v636 = vunpack.c.l.b16 %v600
      %v637 = vunpack.c.h.b16 %v600
      %v638 = vunpack.c.l.b16 %v601
      %v639 = vunpack.c.h.b16 %v601
      %v640 = vunpack.c.l.b16 %v602
      %v641 = vunpack.c.h.b16 %v602
      %v642 = vunpack.c.l.b16 %v603
      %v643 = vunpack.c.h.b16 %v603
      %v644 = vunpack.c.l.b16 %v604
      %v645 = vunpack.c.h.b16 %v604
      %v646 = vunpack.c.l.b16 %v605
      %v647 = vunpack.c.h.b16 %v605
      %v648 = vunpack.c.l.b16 %v606
      %v649 = vunpack.c.h.b16 %v606
      %v650 = vunpack.c.l.b16 %v607
      %v651 = vunpack.c.h.b16 %v607
      %v652 = vunpack.c.l.b16 %v608
      %v653 = vunpack.c.h.b16 %v608
      %v654 = vunpack.c.l.b16 %v609
      %v655 = vunpack.c.h.b16 %v609
      %v656 = vunpack.c.l.b16 %v610
      %v657 = vunpack.c.h.b16 %v610
      %v658 = vunpack.c.l.b16 %v611
      %v659 = vunpack.c.h.b16 %v611
      %v660 = vpack.c.b16 %v628, %v628
      %v661 = vpack.c.b16 %v629, %v629
      %v662 = vpack.c.b16 %v630, %v630
      %v663 = vpack.c.b16 %v631, %v631
      %v664 = vpack.c.b16 %v632, %v632
      %v665 = vpack.c.b16 %v633, %v633
      %v666 = vpack.c.b16 %v634, %v634
      %v667 = vpack.c.b16 %v635, %v635
      %v668 = vpack.c.b16 %v636, %v636
      %v669 = vpack.c.b16 %v637, %v637
      %v670 = vpack.c.b16 %v638, %v638
      %v671 = vpack.c.b16 %v639, %v639
      %v672 = vpack.c.b16 %v640, %v640
      %v673 = vpack.c.b16 %v641, %v641
      %v674 = vpack.c.b16 %v642, %v642
      %v675 = vpack.c.b16 %v643, %v643
      %v676 = vpack.c.b16 %v644, %v644
      %v677 = vpack.c.b16 %v645, %v645
      %v678 = vpack.c.b16 %v646, %v646
      %v679 = vpack.c.b16 %v647, %v647
      %v680 = vpack.c.b16 %v648, %v648
      %v681 = vpack.c.b16 %v649, %v649
      %v682 = vpack.c.b16 %v650, %v650
      %v683 = vpack.c.b16 %v651, %v651
      %v684 = vpack.c.b16 %v652, %v652
      %v685 = vpack.c.b16 %v653, %v653
      %v686 = vpack.c.b16 %v654, %v654
      %v687 = vpack.c.b16 %v655, %v655
      %v688 = vpack.c.b16 %v656, %v656
      %v689 = vpack.c.b16 %v657, %v657
      %v690 = vpack.c.b16 %v658, %v658
      %v691 = vpack.c.b16 %v659, %v659
      %vm724 = vcmask 27648
      %725 = vst.msk [vmem:[%s249] sm:$0xf] %vm724, %v660
      %726 = vst.msk [vmem:[%s249 + $0x4] sm:$0xf] %vm724, %v661
      %727 = vst.msk [vmem:[%s249 + $0x8] sm:$0xf] %vm724, %v662
      %728 = vst.msk [vmem:[%s249 + $0xc] sm:$0xf] %vm724, %v663
      %729 = vst.msk [vmem:[%s249 + $0x10] sm:$0xf] %vm724, %v664
      %730 = vst.msk [vmem:[%s249 + $0x14] sm:$0xf] %vm724, %v665
      %731 = vst.msk [vmem:[%s249 + $0x18] sm:$0xf] %vm724, %v666
      %732 = vst.msk [vmem:[%s249 + $0x1c] sm:$0xf] %vm724, %v667
      %733 = vst.msk [vmem:[%s249 + $0x20] sm:$0xf] %vm724, %v668
      %734 = vst.msk [vmem:[%s249 + $0x24] sm:$0xf] %vm724, %v669
      %735 = vst.msk [vmem:[%s249 + $0x28] sm:$0xf] %vm724, %v670
      %736 = vst.msk [vmem:[%s249 + $0x2c] sm:$0xf] %vm724, %v671
      %737 = vst.msk [vmem:[%s249 + $0x30] sm:$0xf] %vm724, %v672
      %738 = vst.msk [vmem:[%s249 + $0x34] sm:$0xf] %vm724, %v673
      %739 = vst.msk [vmem:[%s249 + $0x38] sm:$0xf] %vm724, %v674
      %740 = vst.msk [vmem:[%s249 + $0x3c] sm:$0xf] %vm724, %v675
      %741 = vst.msk [vmem:[%s249 + $0x40] sm:$0xf] %vm724, %v676
      %742 = vst.msk [vmem:[%s249 + $0x44] sm:$0xf] %vm724, %v677
      %743 = vst.msk [vmem:[%s249 + $0x48] sm:$0xf] %vm724, %v678
      %744 = vst.msk [vmem:[%s249 + $0x4c] sm:$0xf] %vm724, %v679
      %745 = vst.msk [vmem:[%s249 + $0x50] sm:$0xf] %vm724, %v680
      %746 = vst.msk [vmem:[%s249 + $0x54] sm:$0xf] %vm724, %v681
      %747 = vst.msk [vmem:[%s249 + $0x58] sm:$0xf] %vm724, %v682
      %748 = vst.msk [vmem:[%s249 + $0x5c] sm:$0xf] %vm724, %v683
      %749 = vst.msk [vmem:[%s249 + $0x60] sm:$0xf] %vm724, %v684
      %750 = vst.msk [vmem:[%s249 + $0x64] sm:$0xf] %vm724, %v685
      %751 = vst.msk [vmem:[%s249 + $0x68] sm:$0xf] %vm724, %v686
      %752 = vst.msk [vmem:[%s249 + $0x6c] sm:$0xf] %vm724, %v687
      %753 = vst.msk [vmem:[%s249 + $0x70] sm:$0xf] %vm724, %v688
      %754 = vst.msk [vmem:[%s249 + $0x74] sm:$0xf] %vm724, %v689
      %755 = vst.msk [vmem:[%s249 + $0x78] sm:$0xf] %vm724, %v690
      %756 = vst.msk [vmem:[%s249 + $0x7c] sm:$0xf] %vm724, %v691
      %757 = vrot.lane.b32.xlu0 %v660, 124
      %v758 = vpop.permute.xlu0 %757
      %759 = vrot.lane.b32.xlu0 %v661, 124
      %v760 = vpop.permute.xlu0 %759
      %761 = vrot.lane.b32.xlu0 %v662, 124
      %v762 = vpop.permute.xlu0 %761
      %763 = vrot.lane.b32.xlu0 %v663, 124
      %v764 = vpop.permute.xlu0 %763
      %765 = vrot.lane.b32.xlu0 %v664, 124
      %v766 = vpop.permute.xlu0 %765
      %767 = vrot.lane.b32.xlu0 %v665, 124
      %v768 = vpop.permute.xlu0 %767
      %769 = vrot.lane.b32.xlu0 %v666, 124
      %v770 = vpop.permute.xlu0 %769
      %771 = vrot.lane.b32.xlu0 %v667, 124
      %v772 = vpop.permute.xlu0 %771
      %773 = vrot.lane.b32.xlu0 %v668, 124
      %v774 = vpop.permute.xlu0 %773
      %775 = vrot.lane.b32.xlu0 %v669, 124
      %v776 = vpop.permute.xlu0 %775
      %777 = vrot.lane.b32.xlu0 %v670, 124
      %v778 = vpop.permute.xlu0 %777
      %779 = vrot.lane.b32.xlu0 %v671, 124
      %v780 = vpop.permute.xlu0 %779
      %781 = vrot.lane.b32.xlu0 %v672, 124
      %v782 = vpop.permute.xlu0 %781
      %783 = vrot.lane.b32.xlu0 %v673, 124
      %v784 = vpop.permute.xlu0 %783
      %785 = vrot.lane.b32.xlu0 %v674, 124
      %v786 = vpop.permute.xlu0 %785
      %787 = vrot.lane.b32.xlu0 %v675, 124
      %v788 = vpop.permute.xlu0 %787
      %789 = vrot.lane.b32.xlu0 %v676, 124
      %v790 = vpop.permute.xlu0 %789
      %791 = vrot.lane.b32.xlu0 %v677, 124
      %v792 = vpop.permute.xlu0 %791
      %793 = vrot.lane.b32.xlu0 %v678, 124
      %v794 = vpop.permute.xlu0 %793
      %795 = vrot.lane.b32.xlu0 %v679, 124
      %v796 = vpop.permute.xlu0 %795
      %797 = vrot.lane.b32.xlu0 %v680, 124
      %v798 = vpop.permute.xlu0 %797
      %799 = vrot.lane.b32.xlu0 %v681, 124
      %v800 = vpop.permute.xlu0 %799
      %801 = vrot.lane.b32.xlu0 %v682, 124
      %v802 = vpop.permute.xlu0 %801
      %803 = vrot.lane.b32.xlu0 %v683, 124
      %v804 = vpop.permute.xlu0 %803
      %805 = vrot.lane.b32.xlu0 %v684, 124
      %v806 = vpop.permute.xlu0 %805
      %807 = vrot.lane.b32.xlu0 %v685, 124
      %v808 = vpop.permute.xlu0 %807
      %809 = vrot.lane.b32.xlu0 %v686, 124
      %v810 = vpop.permute.xlu0 %809
      %811 = vrot.lane.b32.xlu0 %v687, 124
      %v812 = vpop.permute.xlu0 %811
      %813 = vrot.lane.b32.xlu0 %v688, 124
      %v814 = vpop.permute.xlu0 %813
      %815 = vrot.lane.b32.xlu0 %v689, 124
      %v816 = vpop.permute.xlu0 %815
      %817 = vrot.lane.b32.xlu0 %v690, 124
      %v818 = vpop.permute.xlu0 %817
      %819 = vrot.lane.b32.xlu0 %v691, 124
      %v820 = vpop.permute.xlu0 %819
      %853 = vst.msk [vmem:[%s259] sm:$0xf] %vm724, %v758
      %854 = vst.msk [vmem:[%s259 + $0x4] sm:$0xf] %vm724, %v760
      %855 = vst.msk [vmem:[%s259 + $0x8] sm:$0xf] %vm724, %v762
      %856 = vst.msk [vmem:[%s259 + $0xc] sm:$0xf] %vm724, %v764
      %857 = vst.msk [vmem:[%s259 + $0x10] sm:$0xf] %vm724, %v766
      %858 = vst.msk [vmem:[%s259 + $0x14] sm:$0xf] %vm724, %v768
      %859 = vst.msk [vmem:[%s259 + $0x18] sm:$0xf] %vm724, %v770
      %860 = vst.msk [vmem:[%s259 + $0x1c] sm:$0xf] %vm724, %v772
      %861 = vst.msk [vmem:[%s259 + $0x20] sm:$0xf] %vm724, %v774
      %862 = vst.msk [vmem:[%s259 + $0x24] sm:$0xf] %vm724, %v776
      %863 = vst.msk [vmem:[%s259 + $0x28] sm:$0xf] %vm724, %v778
      %864 = vst.msk [vmem:[%s259 + $0x2c] sm:$0xf] %vm724, %v780
      %865 = vst.msk [vmem:[%s259 + $0x30] sm:$0xf] %vm724, %v782
      %866 = vst.msk [vmem:[%s259 + $0x34] sm:$0xf] %vm724, %v784
      %867 = vst.msk [vmem:[%s259 + $0x38] sm:$0xf] %vm724, %v786
      %868 = vst.msk [vmem:[%s259 + $0x3c] sm:$0xf] %vm724, %v788
      %869 = vst.msk [vmem:[%s259 + $0x40] sm:$0xf] %vm724, %v790
      %870 = vst.msk [vmem:[%s259 + $0x44] sm:$0xf] %vm724, %v792
      %871 = vst.msk [vmem:[%s259 + $0x48] sm:$0xf] %vm724, %v794
      %872 = vst.msk [vmem:[%s259 + $0x4c] sm:$0xf] %vm724, %v796
      %873 = vst.msk [vmem:[%s259 + $0x50] sm:$0xf] %vm724, %v798
      %874 = vst.msk [vmem:[%s259 + $0x54] sm:$0xf] %vm724, %v800
      %875 = vst.msk [vmem:[%s259 + $0x58] sm:$0xf] %vm724, %v802
      %876 = vst.msk [vmem:[%s259 + $0x5c] sm:$0xf] %vm724, %v804
      %877 = vst.msk [vmem:[%s259 + $0x60] sm:$0xf] %vm724, %v806
      %878 = vst.msk [vmem:[%s259 + $0x64] sm:$0xf] %vm724, %v808
      %879 = vst.msk [vmem:[%s259 + $0x68] sm:$0xf] %vm724, %v810
      %880 = vst.msk [vmem:[%s259 + $0x6c] sm:$0xf] %vm724, %v812
      %881 = vst.msk [vmem:[%s259 + $0x70] sm:$0xf] %vm724, %v814
      %882 = vst.msk [vmem:[%s259 + $0x74] sm:$0xf] %vm724, %v816
      %883 = vst.msk [vmem:[%s259 + $0x78] sm:$0xf] %vm724, %v818
      %884 = vst.msk [vmem:[%s259 + $0x7c] sm:$0xf] %vm724, %v820
      %s885 = smul.u32 32, %s21
      %p886 = scmp.lt.s32.totalorder %s20, 1
      %s887 = scalar_select %p886, %s20, 1
      %p888 = scmp.lt.s32.totalorder %s885, 31
      %s889 = scalar_select %p888, %s885, 31
      %s890 = smul.addr %s887, 32
      %s891 = sadd.s32 %s889, %s890
      %s892 = smul.addr %s891, 4
      %s893 = scalar_lea.vmem %s3, %s892
      %s894 = smul.u32 32, %s21
      %p895 = scmp.lt.s32.totalorder %s20, 1
      %s896 = scalar_select %p895, %s20, 1
      %p897 = scmp.lt.s32.totalorder %s894, 31
      %s898 = scalar_select %p897, %s894, 31
      %s899 = smul.addr %s896, 32
      %s900 = sadd.s32 %s898, %s899
      %s901 = smul.addr %s900, 4
      %s902 = scalar_lea.vmem %s4, %s901
      // Predicated region
      $region33: #{tpu_custom_call.1} parent=31 // pred_check
        %p903 = pneg %p118
      $region34: #{tpu_custom_call.1} parent=31 // pred_check_branch
        %905 = sbr.rel (%p903) target = $region36
      $region35: #{tpu_custom_call.1} parent=31 // pred_region
        %s906 = smul.u32 32, %s21
      $region36: #{tpu_custom_call.1} parent=31 // pred_fallthru
        _
      // Predicated region
      $region37: #{tpu_custom_call.1} parent=31 // pred_check
        %p907 = pneg %p146
      $region38: #{tpu_custom_call.1} parent=31 // pred_check_branch
        %909 = sbr.rel (%p907) target = $region40
      $region39: #{tpu_custom_call.1} parent=31 // pred_region
        %s910 = smul.u32 32, %s21
      $region40: #{tpu_custom_call.1} parent=31 // pred_fallthru
        _
    $region32: #{tpu_custom_call.1} parent=5 // pred_fallthru
      _
    %p911 = scmp.le.s32.totalorder 2, %s11
    // Predicated region
    $region41: #{tpu_custom_call.1} parent=5 // pred_check
      %p912 = pneg %p911
    $region42: #{tpu_custom_call.1} parent=5 // pred_check_branch
      %914 = sbr.rel (%p912) target = $region44
    $region43: #{tpu_custom_call.1} parent=5 // pred_region
      %s915 = ssub.s32 %s11, 2
      // Predicated region
      $region45: #{tpu_custom_call.1} parent=43 // pred_check
        %p916 = pneg %p124
      $region46: #{tpu_custom_call.1} parent=43 // pred_check_branch
        %918 = sbr.rel (%p916) target = $region48
      $region47: #{tpu_custom_call.1} parent=43 // pred_region
        %s919 = smul.u32 32, %s23
        %p920 = scmp.lt.s32.totalorder %s22, 1
        %s921 = scalar_select %p920, %s22, 1
        %p922 = scmp.lt.s32.totalorder %s919, 31
        %s923 = scalar_select %p922, %s919, 31
        %s924 = smul.addr %s921, 32
        %s925 = sadd.s32 %s923, %s924
        %s926 = smul.addr %s925, 4
        %s927 = scalar_lea.vmem %s3, %s926
      $region48: #{tpu_custom_call.1} parent=43 // pred_fallthru
        _
      // Predicated region
      $region49: #{tpu_custom_call.1} parent=43 // pred_check
        %p928 = pneg %p152
      $region50: #{tpu_custom_call.1} parent=43 // pred_check_branch
        %930 = sbr.rel (%p928) target = $region52
      $region51: #{tpu_custom_call.1} parent=43 // pred_region
        %s931 = smul.u32 32, %s23
        %p932 = scmp.lt.s32.totalorder %s22, 1
        %s933 = scalar_select %p932, %s22, 1
        %p934 = scmp.lt.s32.totalorder %s931, 31
        %s935 = scalar_select %p934, %s931, 31
        %s936 = smul.addr %s933, 32
        %s937 = sadd.s32 %s935, %s936
        %s938 = smul.addr %s937, 4
        %s939 = scalar_lea.vmem %s4, %s938
      $region52: #{tpu_custom_call.1} parent=43 // pred_fallthru
        _
    $region44: #{tpu_custom_call.1} parent=5 // pred_fallthru
      _
  $region6: #{tpu_custom_call.1} parent=0 // loop_footer
    %s15 = sadd.s32 1, %s11
  $region7: #{tpu_custom_call.1} parent=0 // loop_footer_branch
    %10 = sbr.rel target = $region3
  $region8: #{tpu_custom_call.1} parent=0 // loop_exit
    _

</llo_original>
